<compile_context>
chip_gen: v5e
topology: v5e:2x2
jax: 0.10.0
libtpu: 0.0.40
codegen_flags: <defaults>
</compile_context>

<pallas_src>
import functools

import numpy as np
import jax
import jax.numpy as jnp
from jax.experimental import pallas as pl
from jax.experimental.pallas import tpu as pltpu


def _round_up(x, m):
    return ((x + m - 1) // m) * m


def _layout(reward_dim, action_dim, hidden_dim):
    """Static row/column layout of the packed, lane-padded parameter buffer."""
    in_dim = 1 + reward_dim + 1
    out_dim = action_dim * reward_dim
    HP = _round_up(hidden_dim, 128)        # lane-padded hidden width
    OP = _round_up(out_dim, 128)           # lane-padded (internal) output width
    PW = max(HP, OP)                       # packed buffer lane width
    in_rows = _round_up(in_dim, 8)         # sublane-padded input width (K of fc1)
    w1_off = 0
    b1_off = in_rows
    w2_off = b1_off + 8
    b2_off = w2_off + HP
    w3_off = b2_off + 8
    b3_off = w3_off + HP
    rows = b3_off + 8
    return dict(in_dim=in_dim, out_dim=out_dim, in_rows=in_rows,
                HP=HP, OP=OP, PW=PW, rows=rows,
                w1_off=w1_off, b1_off=b1_off, w2_off=w2_off, b2_off=b2_off,
                w3_off=w3_off, b3_off=b3_off)


def pack_params(params, *, reward_dim, action_dim, hidden_dim):
    """Pack (w1,b1,w2,b2,w3,b3) into one zero-padded lane-dense f32 buffer.

    Weights are stored as (in_features, out_features) (transposed vs nn.Linear),
    biases as (out_features,). Done once at init time, not per call.
    """
    w1, b1, w2, b2, w3, b3 = (np.asarray(p, np.float32) for p in params)
    L = _layout(reward_dim, action_dim, hidden_dim)
    buf = np.zeros((L["rows"], L["PW"]), np.float32)
    buf[L["w1_off"]:L["w1_off"] + L["in_dim"], :hidden_dim] = w1
    buf[L["b1_off"], :hidden_dim] = b1.reshape(-1)
    buf[L["w2_off"]:L["w2_off"] + hidden_dim, :hidden_dim] = w2
    buf[L["b2_off"], :hidden_dim] = b2.reshape(-1)
    buf[L["w3_off"]:L["w3_off"] + hidden_dim, :L["out_dim"]] = w3
    buf[L["b3_off"], :L["out_dim"]] = b3.reshape(-1)
    return jnp.asarray(buf)


def _pick_tiles(B, *, cap=2048, multi_tile_threshold=256):
    """Pick (TB, B_pad, n_tiles): sublane-quantum padding, >=2 tiles for large B."""
    B8 = _round_up(B, 8)
    if B8 <= multi_tile_threshold:
        n = 1                                  # tiny batch: one tile, no overhead
    else:
        # >=2 tiles so v7x's two TensorCores both get work; cap tile at ~2048
        # rows so per-step overhead is amortized without stressing VMEM.
        n = max(2, -(-B8 // cap))
    TB = _round_up(-(-B8 // n), 8)
    return TB, n * TB, n


def qnetwork_forward(state, Racc, t, packed_params, *,
                     action_dim, reward_dim, hidden_dim):
    """state: (B,1), Racc: (B,reward_dim), t: (B,1) -> (B, action_dim, reward_dim)."""
    L = _layout(reward_dim, action_dim, hidden_dim)
    IN8, OUT = L["in_rows"], L["out_dim"]
    HP, OP, PW = L["HP"], L["OP"], L["PW"]
    w1_off, b1_off = L["w1_off"], L["b1_off"]
    w2_off, b2_off = L["w2_off"], L["b2_off"]
    w3_off, b3_off = L["w3_off"], L["b3_off"]

    B = state.shape[0]
    # Single packed input [state | Racc | t | zeros] -> one (B, IN8) stream and
    # one small-K matmul in the kernel (no K=3 dot, no lane-broadcast FMAs).
    x = jnp.concatenate(
        [state.astype(jnp.float32), Racc.astype(jnp.float32),
         t.astype(jnp.float32)], axis=-1)

    TB, B_pad, n_tiles = _pick_tiles(B)
    x = jnp.pad(x, ((0, B_pad - B), (0, IN8 - L["in_dim"])))

    def kernel(x_ref, p_ref, o_ref):
        xb = x_ref[...]                                     # (TB, IN8)

        # ---- layer 1: single small-K matmul (zero rows/lanes contribute 0).
        w1 = p_ref[w1_off:w1_off + IN8, :HP]                # (IN8, HP)
        b1 = p_ref[b1_off:b1_off + 1, :HP]                  # (1, HP)
        h1 = jnp.maximum(
            jnp.dot(xb, w1, preferred_element_type=jnp.float32) + b1, 0.0)

        # ---- layer 2 (full 128-lane tiles).
        w2 = p_ref[w2_off:w2_off + HP, :HP]
        b2 = p_ref[b2_off:b2_off + 1, :HP]
        h2 = jnp.maximum(
            jnp.dot(h1, w2, preferred_element_type=jnp.float32) + b2, 0.0)

        # ---- layer 3: padded matmul internally, narrow store of real lanes.
        w3 = p_ref[w3_off:w3_off + HP, :OP]
        b3 = p_ref[b3_off:b3_off + 1, :OP]
        out = jnp.dot(h2, w3, preferred_element_type=jnp.float32) + b3
        o_ref[...] = out[:, :OUT].astype(o_ref.dtype)

    out_pad = pl.pallas_call(
        kernel,
        out_shape=jax.ShapeDtypeStruct((B_pad, OUT), jnp.float32),
        grid_spec=pltpu.PrefetchScalarGridSpec(
            num_scalar_prefetch=0,
            grid=(n_tiles,),
            in_specs=[
                # Packed [state|Racc|t|0] rows; last dim == full array last dim.
                pl.BlockSpec((TB, IN8), lambda i: (i, 0)),
                # Packed params: single DMA, resident across the batch grid.
                pl.BlockSpec((L["rows"], PW), lambda i: (0, 0)),
            ],
            # Narrow (un-padded) output: last dim == full array last dim (legal),
            # ~10x less writeback than a 128-lane padded store + wrapper slice.
            out_specs=pl.BlockSpec((TB, OUT), lambda i: (i, 0)),
        ),
        compiler_params=pltpu.CompilerParams(
            dimension_semantics=("parallel",)),   # shard batch on v7x's 2 TCs
    )(x, packed_params)

    out = out_pad[:B] if B_pad != B else out_pad
    return out.reshape(B, action_dim, reward_dim)


def init_params(key, reward_dim, action_dim, hidden_dim):
    """Synthetic nn.Linear-style init; weights stored transposed as (in, out)."""
    in_dim = 1 + reward_dim + 1
    out_dim = action_dim * reward_dim
    ks = jax.random.split(key, 6)

    def lin(kw, kb, fan_in, fan_out):
        bound = 1.0 / np.sqrt(np.float32(fan_in))
        w = jax.random.uniform(kw, (fan_in, fan_out), jnp.float32, -bound, bound)
        b = jax.random.uniform(kb, (fan_out,), jnp.float32, -bound, bound)
        return w, b

    w1, b1 = lin(ks[0], ks[1], in_dim, hidden_dim)
    w2, b2 = lin(ks[2], ks[3], hidden_dim, hidden_dim)
    w3, b3 = lin(ks[4], ks[5], hidden_dim, out_dim)
    return (w1, b1, w2, b2, w3, b3)


def _reference(params, state, Racc, t, action_dim, reward_dim):
    w1, b1, w2, b2, w3, b3 = params
    x = jnp.concatenate([state, Racc, t], axis=-1)
    h1 = jnp.maximum(x @ w1 + b1, 0.0)
    h2 = jnp.maximum(h1 @ w2 + b2, 0.0)
    return (h2 @ w3 + b3).reshape(-1, action_dim, reward_dim)


if __name__ == "__main__":
    # Small, module-consistent sizes (hidden_dim matches the nn.Module default).
    reward_dim = 3
    action_dim = 4
    hidden_dim = 64

    key = jax.random.PRNGKey(0)
    k_state, k_racc, k_t, k_params = jax.random.split(key, 4)

    params = init_params(k_params, reward_dim, action_dim, hidden_dim)
    packed = pack_params(params, reward_dim=reward_dim, action_dim=action_dim,
                         hidden_dim=hidden_dim)

    fwd = jax.jit(functools.partial(
        qnetwork_forward, action_dim=action_dim, reward_dim=reward_dim,
        hidden_dim=hidden_dim))

    ok = True
    # B=8: single-tile path; B=600: multi-tile ("parallel") path with ragged
    # batch padded only to the sublane quantum (no padding to the tile size).
    for B in (8, 600):
        kb = jax.random.fold_in(key, B)
        k1, k2, k3 = jax.random.split(kb, 3)
        state = jax.random.normal(k1, (B, 1), jnp.float32)
        Racc = jax.random.normal(k2, (B, reward_dim), jnp.float32)
        t = jax.random.uniform(k3, (B, 1), jnp.float32)

        out = fwd(state, Racc, t, packed)
        jax.block_until_ready(out)

        ref = _reference(params, state, Racc, t, action_dim, reward_dim)
        assert out.shape == (B, action_dim, reward_dim), out.shape
        err = float(jnp.max(jnp.abs(out - ref)))
        ok = ok and bool(jnp.allclose(out, ref, atol=1e-4, rtol=1e-4))
        assert ok, f"B={B} max abs err {err}"

    print("KERNEL_OK")
</pallas_src>

<mosaic_0001>
module attributes {stable_mosaic.version = 11 : i64} {
  func.func @kernel(%arg0: i32, %arg1: memref<8x8xf32, #tpu.memory_space<vmem>>, %arg2: memref<288x128xf32, #tpu.memory_space<vmem>>, %arg3: memref<8x12xf32, #tpu.memory_space<vmem>>) attributes {dimension_semantics = [#tpu.dimension_semantics<parallel>], iteration_bounds = array<i64: 1>, scalar_prefetch = 0 : i64, scratch_operands = 0 : i64, tpu.core_type = #tpu.core_type<tc>, window_params = [{transform_indices = @transform_0, window_bounds = array<i64: 8, 8>}, {pipeline_mode = #tpu.pipeline_mode<synchronous>, transform_indices = @transform_1, window_bounds = array<i64: 288, 128>}, {transform_indices = @transform_2, window_bounds = array<i64: 8, 12>}]} {
    %c0 = arith.constant 0 : index
    %c0_0 = arith.constant 0 : index
    %0 = vector.load %arg1[%c0, %c0_0] : memref<8x8xf32, #tpu.memory_space<vmem>>, vector<8x8xf32>
    %c0_1 = arith.constant 0 : index
    %c0_2 = arith.constant 0 : index
    %1 = vector.load %arg2[%c0_1, %c0_2] : memref<288x128xf32, #tpu.memory_space<vmem>>, vector<8x128xf32>
    %c8 = arith.constant 8 : index
    %c0_3 = arith.constant 0 : index
    %2 = vector.load %arg2[%c8, %c0_3] : memref<288x128xf32, #tpu.memory_space<vmem>>, vector<1x128xf32>
    %cst = arith.constant dense<0.000000e+00> : vector<8x128xf32>
    %3 = tpu.matmul %0, %1, %cst {dimension_numbers = #tpu.dot_dimension_numbers<[1], [0], [0], [1], [0, 0, 1, 1], [], []>} : vector<8x8xf32>, vector<8x128xf32>, vector<8x128xf32> -> vector<8x128xf32>
    %4 = vector.broadcast %2 : vector<1x128xf32> to vector<8x128xf32>
    %5 = arith.addf %3, %4 : vector<8x128xf32>
    %cst_4 = arith.constant 0.000000e+00 : f32
    %6 = vector.broadcast %cst_4 : f32 to vector<8x128xf32>
    %7 = arith.maximumf %5, %6 : vector<8x128xf32>
    %c16 = arith.constant 16 : index
    %c0_5 = arith.constant 0 : index
    %8 = vector.load %arg2[%c16, %c0_5] : memref<288x128xf32, #tpu.memory_space<vmem>>, vector<128x128xf32>
    %c144 = arith.constant 144 : index
    %c0_6 = arith.constant 0 : index
    %9 = vector.load %arg2[%c144, %c0_6] : memref<288x128xf32, #tpu.memory_space<vmem>>, vector<1x128xf32>
    %cst_7 = arith.constant dense<0.000000e+00> : vector<8x128xf32>
    %10 = tpu.matmul %7, %8, %cst_7 {dimension_numbers = #tpu.dot_dimension_numbers<[1], [0], [0], [1], [0, 0, 1, 1], [], []>} : vector<8x128xf32>, vector<128x128xf32>, vector<8x128xf32> -> vector<8x128xf32>
    %11 = vector.broadcast %9 : vector<1x128xf32> to vector<8x128xf32>
    %12 = arith.addf %10, %11 : vector<8x128xf32>
    %cst_8 = arith.constant 0.000000e+00 : f32
    %13 = vector.broadcast %cst_8 : f32 to vector<8x128xf32>
    %14 = arith.maximumf %12, %13 : vector<8x128xf32>
    %c152 = arith.constant 152 : index
    %c0_9 = arith.constant 0 : index
    %15 = vector.load %arg2[%c152, %c0_9] : memref<288x128xf32, #tpu.memory_space<vmem>>, vector<128x128xf32>
    %c280 = arith.constant 280 : index
    %c0_10 = arith.constant 0 : index
    %16 = vector.load %arg2[%c280, %c0_10] : memref<288x128xf32, #tpu.memory_space<vmem>>, vector<1x128xf32>
    %cst_11 = arith.constant dense<0.000000e+00> : vector<8x128xf32>
    %17 = tpu.matmul %14, %15, %cst_11 {dimension_numbers = #tpu.dot_dimension_numbers<[1], [0], [0], [1], [0, 0, 1, 1], [], []>} : vector<8x128xf32>, vector<128x128xf32>, vector<8x128xf32> -> vector<8x128xf32>
    %18 = vector.broadcast %16 : vector<1x128xf32> to vector<8x128xf32>
    %19 = arith.addf %17, %18 : vector<8x128xf32>
    %20 = vector.extract_strided_slice %19 {offsets = [0, 0], sizes = [8, 12], strides = [1, 1]} : vector<8x128xf32> to vector<8x12xf32>
    %c0_12 = arith.constant 0 : index
    %c0_13 = arith.constant 0 : index
    %21 = vector.load %arg3[%c0_12, %c0_13] : memref<8x12xf32, #tpu.memory_space<vmem>>, vector<8x12xf32>
    tpu.vector_store %arg3[%c0_12, %c0_13], %20 {strides = array<i32>} : memref<8x12xf32, #tpu.memory_space<vmem>>, vector<8x12xf32>,
    return
  }
  func.func @transform_0(%arg0: i32) -> (i32, i32) {
    %c0_i32 = arith.constant 0 : i32
    %c0_i32_0 = arith.constant 0 : i32
    return %arg0, %c0_i32 : i32, i32
  }
  func.func @transform_1(%arg0: i32) -> (i32, i32) {
    %c0_i32 = arith.constant 0 : i32
    %c0_i32_0 = arith.constant 0 : i32
    %c0_i32_1 = arith.constant 0 : i32
    return %c0_i32, %c0_i32_0 : i32, i32
  }
  func.func @transform_2(%arg0: i32) -> (i32, i32) {
    %c0_i32 = arith.constant 0 : i32
    %c0_i32_0 = arith.constant 0 : i32
    return %arg0, %c0_i32 : i32, i32
  }
}

</mosaic_0001>

<llo_original>
// kernel: qnetwork_forward.1
$region0: #{qnetwork_forward.1}
  #allocation0 [shape = 'u32[]', space=smem, size = 0x4, offset = 0x4, fixed_abs, tag = 'smem constant byte address 0x4 - core index']
  #allocation1 [shape = 'u32[72,128]{1,0:T(1,128)}', space=vmem, size = 0x9000, scoped, tag = 'internal scratch']
  %s0 = inlined_call_operand.vmem [shape: f32[8,8], index: 0, kind: input, shape index: {}]
  %s1 = inlined_call_operand.hbm [shape: f32[288,128], index: 1, kind: input, shape index: {}]
  %s2 = inlined_call_operand.vmem [shape: f32[8,12], index: 2, kind: output, shape index: {}]
  %s3 = sld [smem:[#allocation0]]
  $region22: #{qnetwork_forward.1} parent=0
    _
  %s5 = ssub.s32 1, %s3
  %s6 = scalar_select 0, %s5, %s3
  $region1: #{qnetwork_forward.1} parent=0
    #allocation2 [shape = 'u8[147456]{0}', space=vmem, size = 0x24000, scoped, tag = 'input window, operand 1, single buffered']
    #allocation3 [shape = 's32[1]{0}', space=sflag, size = 0x4, scoped, tag = 'scoped memory for qnetwork_forward.1']
    %7 = vsyncpa [#allocation3], 0
    // Predicated region
    $region2: #{qnetwork_forward.1} parent=1 // pred_check
      _
    $region3: #{qnetwork_forward.1} parent=1 // pred_check_branch
      %9 = sbr.rel (0) target = $region5
    $region4: #{qnetwork_forward.1} parent=1 // pred_region
      _
    $region5: #{qnetwork_forward.1} parent=1 // pred_fallthru
      _
    // Predicated region
    $region6: #{qnetwork_forward.1} parent=1 // pred_check
      _
    $region7: #{qnetwork_forward.1} parent=1 // pred_check_branch
      %11 = sbr.rel (0) target = $region9
    $region8: #{qnetwork_forward.1} parent=1 // pred_region
      %13 = vsyncadd [#allocation3], 0
      %s14 = sshll.u32 %s1, 4
      %s15 = int_to_ptr.hbm [resolvable:$true] %s14
      %s16 = sshll.u32 [#allocation2], 4
      %s17 = int_to_ptr.vmem [resolvable:$true] %s16
      %22 = dma.hbm_to_vmem [thread:$0]  %s15, 4608, %s17, [#allocation3], 128, 128, 8
    $region9: #{qnetwork_forward.1} parent=1 // pred_fallthru
      _
    // Predicated region
    $region10: #{qnetwork_forward.1} parent=1 // pred_check
      _
    $region11: #{qnetwork_forward.1} parent=1 // pred_check_branch
      %24 = sbr.rel (0) target = $region13
    $region12: #{qnetwork_forward.1} parent=1 // pred_region
      %26 = dma.done [#allocation3], 4608
    $region13: #{qnetwork_forward.1} parent=1 // pred_fallthru
      _
    %v27 = vld [vmem:[%s0] sm:$0xff]
    %v28 = vld [vmem:[#allocation2] sm:$0xff]
    %v29 = vld [vmem:[#allocation2 + $0x8] sm:$0x1]
    %v30 = vperm.slane %v29, 0
    %vm31 = vcmask 64512
    %v33 = vsel %vm31, %v27, 0
    %35 = vmatpush.msra.mxu0 0.0
    %36 = vmatpush.msra.mxu0 0.0
    %37 = vmatpush.msra.mxu0 0.0
    %38 = vmatpush.msra.mxu0 0.0
    %39 = vmatpush.msra.mxu0 0.0
    %40 = vmatpush.msra.mxu0 0.0
    %41 = vmatpush.msra.mxu0 0.0
    %42 = vmatpush.msra.mxu0 0.0
    %43 = vmatpush.msra.mxu0 0.0
    %44 = vmatpush.msra.mxu0 0.0
    %45 = vmatpush.msra.mxu0 0.0
    %46 = vmatpush.msra.mxu0 0.0
    %47 = vmatpush.msra.mxu0 0.0
    %48 = vmatpush.msra.mxu0 0.0
    %49 = vmatpush.msra.mxu0 0.0
    %50 = vmatpush.msra.mxu0 %v28
    %51 = vmatmul.f32.gmra.mxu0 %v33
    %v52 = vpop.f32.mrf.mxu0
    %v53 = vadd.f32 %v30, %v52
    %54 = vdwg.mxu0
    %v55 = vmax.f32 %v53, 0.0
    %v56 = vld [vmem:[#allocation2 + $0x10] sm:$0xff]
    %v57 = vld [vmem:[#allocation2 + $0x18] sm:$0xff]
    %v58 = vld [vmem:[#allocation2 + $0x20] sm:$0xff]
    %v59 = vld [vmem:[#allocation2 + $0x28] sm:$0xff]
    %v60 = vld [vmem:[#allocation2 + $0x30] sm:$0xff]
    %v61 = vld [vmem:[#allocation2 + $0x38] sm:$0xff]
    %v62 = vld [vmem:[#allocation2 + $0x40] sm:$0xff]
    %v63 = vld [vmem:[#allocation2 + $0x48] sm:$0xff]
    %v64 = vld [vmem:[#allocation2 + $0x50] sm:$0xff]
    %v65 = vld [vmem:[#allocation2 + $0x58] sm:$0xff]
    %v66 = vld [vmem:[#allocation2 + $0x60] sm:$0xff]
    %v67 = vld [vmem:[#allocation2 + $0x68] sm:$0xff]
    %v68 = vld [vmem:[#allocation2 + $0x70] sm:$0xff]
    %v69 = vld [vmem:[#allocation2 + $0x78] sm:$0xff]
    %v70 = vld [vmem:[#allocation2 + $0x80] sm:$0xff]
    %v71 = vld [vmem:[#allocation2 + $0x88] sm:$0xff]
    %v72 = vld [vmem:[#allocation2 + $0x90] sm:$0x1]
    %v73 = vperm.slane %v72, 0
    %74 = vmatpush.msra.mxu0 %v71
    %75 = vmatpush.msra.mxu0 %v70
    %76 = vmatpush.msra.mxu0 %v69
    %77 = vmatpush.msra.mxu0 %v68
    %78 = vmatpush.msra.mxu0 %v67
    %79 = vmatpush.msra.mxu0 %v66
    %80 = vmatpush.msra.mxu0 %v65
    %81 = vmatpush.msra.mxu0 %v64
    %82 = vmatpush.msra.mxu0 %v63
    %83 = vmatpush.msra.mxu0 %v62
    %84 = vmatpush.msra.mxu0 %v61
    %85 = vmatpush.msra.mxu0 %v60
    %86 = vmatpush.msra.mxu0 %v59
    %87 = vmatpush.msra.mxu0 %v58
    %88 = vmatpush.msra.mxu0 %v57
    %89 = vmatpush.msra.mxu0 %v56
    %90 = vmatmul.f32.gmra.mxu0 %v55
    %v91 = vpop.f32.mrf.mxu0
    %v92 = vadd.f32 %v73, %v91
    %93 = vdwg.mxu0
    %v94 = vmax.f32 %v92, 0.0
    %v95 = vld [vmem:[#allocation2 + $0x98] sm:$0xff]
    %v96 = vld [vmem:[#allocation2 + $0xa0] sm:$0xff]
    %v97 = vld [vmem:[#allocation2 + $0xa8] sm:$0xff]
    %v98 = vld [vmem:[#allocation2 + $0xb0] sm:$0xff]
    %v99 = vld [vmem:[#allocation2 + $0xb8] sm:$0xff]
    %v100 = vld [vmem:[#allocation2 + $0xc0] sm:$0xff]
    %v101 = vld [vmem:[#allocation2 + $0xc8] sm:$0xff]
    %v102 = vld [vmem:[#allocation2 + $0xd0] sm:$0xff]
    %v103 = vld [vmem:[#allocation2 + $0xd8] sm:$0xff]
    %v104 = vld [vmem:[#allocation2 + $0xe0] sm:$0xff]
    %v105 = vld [vmem:[#allocation2 + $0xe8] sm:$0xff]
    %v106 = vld [vmem:[#allocation2 + $0xf0] sm:$0xff]
    %v107 = vld [vmem:[#allocation2 + $0xf8] sm:$0xff]
    %v108 = vld [vmem:[#allocation2 + $0x100] sm:$0xff]
    %v109 = vld [vmem:[#allocation2 + $0x108] sm:$0xff]
    %v110 = vld [vmem:[#allocation2 + $0x110] sm:$0xff]
    %v111 = vld [vmem:[#allocation2 + $0x118] sm:$0x1]
    %v112 = vperm.slane %v111, 0
    %113 = vmatpush.msra.mxu0 %v110
    %114 = vmatpush.msra.mxu0 %v109
    %115 = vmatpush.msra.mxu0 %v108
    %116 = vmatpush.msra.mxu0 %v107
    %117 = vmatpush.msra.mxu0 %v106
    %118 = vmatpush.msra.mxu0 %v105
    %119 = vmatpush.msra.mxu0 %v104
    %120 = vmatpush.msra.mxu0 %v103
    %121 = vmatpush.msra.mxu0 %v102
    %122 = vmatpush.msra.mxu0 %v101
    %123 = vmatpush.msra.mxu0 %v100
    %124 = vmatpush.msra.mxu0 %v99
    %125 = vmatpush.msra.mxu0 %v98
    %126 = vmatpush.msra.mxu0 %v97
    %127 = vmatpush.msra.mxu0 %v96
    %128 = vmatpush.msra.mxu0 %v95
    %129 = vmatmul.f32.gmra.mxu0 %v94
    %v130 = vpop.f32.mrf.mxu0
    %v131 = vadd.f32 %v112, %v130
    %132 = vdwg.mxu0
    %vm133 = vcmask 97280
    %134 = vst.msk [vmem:[%s2] sm:$0xff] %vm133, %v131
    // Predicated region
    $region14: #{qnetwork_forward.1} parent=1 // pred_check
      _
    $region15: #{qnetwork_forward.1} parent=1 // pred_check_branch
      %136 = sbr.rel (0) target = $region17
    $region16: #{qnetwork_forward.1} parent=1 // pred_region
      _
    $region17: #{qnetwork_forward.1} parent=1 // pred_fallthru
      _
    // Predicated region
    $region18: #{qnetwork_forward.1} parent=1 // pred_check
      _
    $region19: #{qnetwork_forward.1} parent=1 // pred_check_branch
      %138 = sbr.rel (0) target = $region21
    $region20: #{qnetwork_forward.1} parent=1 // pred_region
      _
    $region21: #{qnetwork_forward.1} parent=1 // pred_fallthru
      _
    %139 = vsyncpa [#allocation3], 1

</llo_original>
